<compile_context>
chip_gen: v7x
topology: tpu7x:2x2x1
jax: 0.10.0
libtpu: 0.0.40
codegen_flags: <defaults>
</compile_context>

<pallas_src>
import functools

import jax
import jax.numpy as jnp
from jax.experimental import pallas as pl
from jax.experimental.pallas import tpu as pltpu


def _round_up(x, m):
    return (x + m - 1) // m * m


def _softplus(x):
    # numerically stable softplus, all VPU/EUP ops
    return jnp.maximum(x, 0.0) + jnp.log1p(jnp.exp(-jnp.abs(x)))


def _resident_spec(shape):
    """BlockSpec for an operand that is identical on every grid step.

    Single-buffered (Buffered(1)) so large resident weights are not
    double-buffered in VMEM; falls back to the default spec if this jax
    version does not expose pipeline_mode / pl.Buffered.
    """
    index_map = lambda i: (0,) * len(shape)
    try:
        return pl.BlockSpec(shape, index_map, pipeline_mode=pl.Buffered(1))
    except (TypeError, AttributeError):
        return pl.BlockSpec(shape, index_map)


def actor_beta_kernel(s_ref, w1_ref, b1_ref, w2_ref, b2_ref,
                      wab_ref, bab_ref, alpha_ref, beta_ref):
    cdt = w1_ref.dtype  # compute dtype of the MXU operands (bf16 by default)

    x = s_ref[...].astype(cdt)

    h1 = jnp.dot(x, w1_ref[...], preferred_element_type=jnp.float32) + b1_ref[...]
    h1 = jnp.tanh(h1)                       # f32 activations (v5e-safe)

    h2 = jnp.dot(h1.astype(cdt), w2_ref[...],
                 preferred_element_type=jnp.float32) + b2_ref[...]
    h2 = jnp.tanh(h2)

    # Fused alpha|beta head: one MXU push, then split in-kernel and store two
    # narrow, unpadded outputs (no wasted writeback lanes).
    z = jnp.dot(h2.astype(cdt), wab_ref[...],
                preferred_element_type=jnp.float32) + bab_ref[...]
    act = _softplus(z) + 1.0
    a_dim = alpha_ref.shape[-1]
    alpha_ref[...] = act[:, :a_dim]
    beta_ref[...] = act[:, a_dim:]


def pack_actor_beta_params(params, compute_dtype=jnp.bfloat16):
    """One-time packing of raw params for the kernel (call once, cache).

    Fuses the alpha/beta heads into a single [H, 2A] matmul and casts the
    matmul weights to the MXU compute dtype; biases stay f32 (added post-MXU).
    """
    wab = jnp.concatenate([params["wa"], params["wb"]], axis=1)
    bab = jnp.concatenate([params["ba"], params["bb"]], axis=1)
    return {
        "w1": params["w1"].astype(compute_dtype),
        "b1": params["b1"].astype(jnp.float32),
        "w2": params["w2"].astype(compute_dtype),
        "b2": params["b2"].astype(jnp.float32),
        "wab": wab.astype(compute_dtype),
        "bab": bab.astype(jnp.float32),
    }


@functools.partial(jax.jit, static_argnames=("block_b",))
def actor_beta_forward(s, packed, *, block_b=2048):
    """Run the Actor_Beta forward pass with a Pallas TPU kernel.

    s: [B, state_dim] float32
    packed: output of pack_actor_beta_params()
    returns (alpha, beta), each [B, action_dim] float32
    """
    B, S = s.shape
    w1, b1 = packed["w1"], packed["b1"]
    w2, b2 = packed["w2"], packed["b2"]
    wab, bab = packed["wab"], packed["bab"]
    H = w1.shape[1]
    A2 = wab.shape[1]
    A = A2 // 2

    # ---- batch tiling --------------------------------------------------------
    # Small/medium batches: one full-size block (bb == B, no padding, no extra
    # grid-step overhead).  Large batches: block_b-row tiles (multiple of 16 so
    # the bf16 LHS cast stays sublane-packed); the ragged final block is
    # handled by Pallas (out-of-bounds rows are dropped on writeback and only
    # affect their own rows in the compute).
    block_b = max(16, _round_up(block_b, 16))
    if B <= block_b:
        bb = B
        n = 1
    else:
        bb = block_b
        n = pl.cdiv(B, bb)
    grid = (n,)

    # ---- VMEM budget (explicit, generous headroom) ---------------------------
    weight_bytes = (w1.size * w1.dtype.itemsize + w2.size * w2.dtype.itemsize
                    + wab.size * wab.dtype.itemsize
                    + (b1.size + b2.size + bab.size) * 4)
    tile_io_bytes = bb * S * s.dtype.itemsize + 2 * bb * A * 4
    act_bytes = bb * (2 * H + 2 * A2) * 4
    vmem_limit = int(min(2 * tile_io_bytes + 2 * weight_bytes + act_bytes
                         + (4 << 20),
                         48 * 1024 * 1024))

    cost = pl.CostEstimate(
        flops=2 * B * (S * H + H * H + H * A2),
        transcendentals=B * (2 * H + 2 * A2),
        bytes_accessed=B * S * s.dtype.itemsize + weight_bytes + 2 * B * A * 4,
    )

    alpha, beta = pl.pallas_call(
        actor_beta_kernel,
        out_shape=(jax.ShapeDtypeStruct((B, A), jnp.float32),
                   jax.ShapeDtypeStruct((B, A), jnp.float32)),
        grid=grid,
        in_specs=[
            pl.BlockSpec((bb, S), lambda i: (i, 0)),   # batch-tiled states
            _resident_spec((S, H)),                    # resident weights/biases
            _resident_spec((1, H)),
            _resident_spec((H, H)),
            _resident_spec((1, H)),
            _resident_spec((H, A2)),                   # fused alpha|beta head
            _resident_spec((1, A2)),
        ],
        out_specs=(pl.BlockSpec((bb, A), lambda i: (i, 0)),
                   pl.BlockSpec((bb, A), lambda i: (i, 0))),
        compiler_params=pltpu.CompilerParams(
            dimension_semantics=("parallel",),
            vmem_limit_bytes=vmem_limit),
        cost_estimate=cost,
    )(s, w1, b1, w2, b2, wab, bab)

    return alpha, beta


def orthogonal(key, out_features, in_features, gain=1.0, dtype=jnp.float32):
    """Deterministic orthogonal init (like nn.init.orthogonal_)."""
    rows, cols = out_features, in_features
    flat = jax.random.normal(key, (max(rows, cols), min(rows, cols)), dtype)
    q, r = jnp.linalg.qr(flat)
    q = q * jnp.sign(jnp.diag(r))
    if rows < cols:
        q = q.T
    return (gain * q[:rows, :cols]).astype(dtype)


def init_actor_beta_params(key, state_dim, hidden_width, action_dim):
    k1, k2, k3, k4 = jax.random.split(key, 4)
    # PyTorch Linear weight is [out, in]; we store transposed [in, out].
    w1 = orthogonal(k1, hidden_width, state_dim, gain=1.0).T
    w2 = orthogonal(k2, hidden_width, hidden_width, gain=1.0).T
    wa = orthogonal(k3, action_dim, hidden_width, gain=0.01).T
    wb = orthogonal(k4, action_dim, hidden_width, gain=0.01).T
    return {
        "w1": w1, "b1": jnp.zeros((1, hidden_width), jnp.float32),
        "w2": w2, "b2": jnp.zeros((1, hidden_width), jnp.float32),
        "wa": wa, "ba": jnp.zeros((1, action_dim), jnp.float32),
        "wb": wb, "bb": jnp.zeros((1, action_dim), jnp.float32),
    }


def reference_forward(s, params, compute_dtype=jnp.float32):
    """Pure-JAX reference with the same weight/activation quantization."""
    cast = lambda x: x.astype(compute_dtype).astype(jnp.float32)
    h1 = jnp.tanh(cast(s) @ cast(params["w1"]) + params["b1"])
    h2 = jnp.tanh(cast(h1) @ cast(params["w2"]) + params["b2"])
    alpha = jax.nn.softplus(cast(h2) @ cast(params["wa"]) + params["ba"]) + 1.0
    beta = jax.nn.softplus(cast(h2) @ cast(params["wb"]) + params["bb"]) + 1.0
    return alpha, beta


if __name__ == "__main__":
    # small shapes consistent with the module: args.state_dim=16,
    # args.hidden_width=32, args.action_dim=8, batch=8
    B, S, H, A = 8, 16, 32, 8

    key = jax.random.PRNGKey(0)
    kp, ks, ks2 = jax.random.split(key, 3)
    params = init_actor_beta_params(kp, S, H, A)
    s = jax.random.normal(ks, (B, S), jnp.float32)

    # One-time packing (hoisted out of the per-call hot path).
    packed_f32 = pack_actor_beta_params(params, compute_dtype=jnp.float32)
    packed_bf16 = pack_actor_beta_params(params)  # default bf16 weights

    # ---- exact f32 path (matches the PyTorch module's math) ----------------
    alpha_f32, beta_f32 = actor_beta_forward(s, packed_f32)
    alpha_f32, beta_f32 = jax.block_until_ready((alpha_f32, beta_f32))
    ref_a, ref_b = reference_forward(s, params, compute_dtype=jnp.float32)
    assert alpha_f32.shape == (B, A) and beta_f32.shape == (B, A)
    assert bool(jnp.all(alpha_f32 > 1.0)) and bool(jnp.all(beta_f32 > 1.0))
    assert jnp.allclose(alpha_f32, ref_a, atol=1e-5, rtol=1e-5)
    assert jnp.allclose(beta_f32, ref_b, atol=1e-5, rtol=1e-5)

    # ---- default bf16-weight path ------------------------------------------
    alpha_bf, beta_bf = actor_beta_forward(s, packed_bf16)
    alpha_bf, beta_bf = jax.block_until_ready((alpha_bf, beta_bf))
    ref_a16, ref_b16 = reference_forward(s, params, compute_dtype=jnp.bfloat16)
    assert jnp.allclose(alpha_bf, ref_a16, atol=5e-3, rtol=5e-3)
    assert jnp.allclose(beta_bf, ref_b16, atol=5e-3, rtol=5e-3)

    # ---- odd batch, single full-size block (bb == B, no pad/slice passes) --
    B2 = 50
    s2 = jax.random.normal(ks2, (B2, S), jnp.float32)
    alpha2, beta2 = actor_beta_forward(s2, packed_bf16)
    alpha2, beta2 = jax.block_until_ready((alpha2, beta2))
    ref_a2, ref_b2 = reference_forward(s2, params, compute_dtype=jnp.bfloat16)
    assert alpha2.shape == (B2, A) and beta2.shape == (B2, A)
    assert jnp.allclose(alpha2, ref_a2, atol=5e-3, rtol=5e-3)
    assert jnp.allclose(beta2, ref_b2, atol=5e-3, rtol=5e-3)

    # ---- multi-step grid with a ragged final block (small block_b) ---------
    alpha3, beta3 = actor_beta_forward(s2, packed_bf16, block_b=16)
    alpha3, beta3 = jax.block_until_ready((alpha3, beta3))
    assert alpha3.shape == (B2, A) and beta3.shape == (B2, A)
    assert jnp.allclose(alpha3, ref_a2, atol=5e-3, rtol=5e-3)
    assert jnp.allclose(beta3, ref_b2, atol=5e-3, rtol=5e-3)

    print("KERNEL_OK")
</pallas_src>

<mosaic_0001>
module attributes {stable_mosaic.version = 11 : i64} {
  func.func @actor_beta_kernel(%arg0: i32, %arg1: memref<8x16xf32, #tpu.memory_space<vmem>>, %arg2: memref<16x32xf32, #tpu.memory_space<vmem>>, %arg3: memref<1x32xf32, #tpu.memory_space<vmem>>, %arg4: memref<32x32xf32, #tpu.memory_space<vmem>>, %arg5: memref<1x32xf32, #tpu.memory_space<vmem>>, %arg6: memref<32x16xf32, #tpu.memory_space<vmem>>, %arg7: memref<1x16xf32, #tpu.memory_space<vmem>>, %arg8: memref<8x8xf32, #tpu.memory_space<vmem>>, %arg9: memref<8x8xf32, #tpu.memory_space<vmem>>) attributes {dimension_semantics = [#tpu.dimension_semantics<parallel>], iteration_bounds = array<i64: 1>, scalar_prefetch = 0 : i64, scratch_operands = 0 : i64, tpu.core_type = #tpu.core_type<tc>, window_params = [{transform_indices = @transform_0, window_bounds = array<i64: 8, 16>}, {pipeline_mode = #tpu.pipeline_mode<synchronous>, transform_indices = @transform_1, window_bounds = array<i64: 16, 32>}, {pipeline_mode = #tpu.pipeline_mode<synchronous>, transform_indices = @transform_2, window_bounds = array<i64: 1, 32>}, {pipeline_mode = #tpu.pipeline_mode<synchronous>, transform_indices = @transform_3, window_bounds = array<i64: 32, 32>}, {pipeline_mode = #tpu.pipeline_mode<synchronous>, transform_indices = @transform_4, window_bounds = array<i64: 1, 32>}, {pipeline_mode = #tpu.pipeline_mode<synchronous>, transform_indices = @transform_5, window_bounds = array<i64: 32, 16>}, {pipeline_mode = #tpu.pipeline_mode<synchronous>, transform_indices = @transform_6, window_bounds = array<i64: 1, 16>}, {transform_indices = @transform_7, window_bounds = array<i64: 8, 8>}, {transform_indices = @transform_8, window_bounds = array<i64: 8, 8>}]} {
    %c0 = arith.constant 0 : index
    %c0_0 = arith.constant 0 : index
    %0 = vector.load %arg1[%c0, %c0_0] : memref<8x16xf32, #tpu.memory_space<vmem>>, vector<8x16xf32>
    %c0_1 = arith.constant 0 : index
    %c0_2 = arith.constant 0 : index
    %1 = vector.load %arg2[%c0_1, %c0_2] : memref<16x32xf32, #tpu.memory_space<vmem>>, vector<16x32xf32>
    %cst = arith.constant dense<0.000000e+00> : vector<8x32xf32>
    %2 = tpu.matmul %0, %1, %cst {dimension_numbers = #tpu.dot_dimension_numbers<[1], [0], [0], [1], [0, 0, 1, 1], [], []>} : vector<8x16xf32>, vector<16x32xf32>, vector<8x32xf32> -> vector<8x32xf32>
    %c0_3 = arith.constant 0 : index
    %c0_4 = arith.constant 0 : index
    %3 = vector.load %arg3[%c0_3, %c0_4] : memref<1x32xf32, #tpu.memory_space<vmem>>, vector<1x32xf32>
    %4 = vector.broadcast %3 : vector<1x32xf32> to vector<8x32xf32>
    %5 = arith.addf %2, %4 : vector<8x32xf32>
    %6 = math.tanh %5 : vector<8x32xf32>
    %c0_5 = arith.constant 0 : index
    %c0_6 = arith.constant 0 : index
    %7 = vector.load %arg4[%c0_5, %c0_6] : memref<32x32xf32, #tpu.memory_space<vmem>>, vector<32x32xf32>
    %cst_7 = arith.constant dense<0.000000e+00> : vector<8x32xf32>
    %8 = tpu.matmul %6, %7, %cst_7 {dimension_numbers = #tpu.dot_dimension_numbers<[1], [0], [0], [1], [0, 0, 1, 1], [], []>} : vector<8x32xf32>, vector<32x32xf32>, vector<8x32xf32> -> vector<8x32xf32>
    %c0_8 = arith.constant 0 : index
    %c0_9 = arith.constant 0 : index
    %9 = vector.load %arg5[%c0_8, %c0_9] : memref<1x32xf32, #tpu.memory_space<vmem>>, vector<1x32xf32>
    %10 = vector.broadcast %9 : vector<1x32xf32> to vector<8x32xf32>
    %11 = arith.addf %8, %10 : vector<8x32xf32>
    %12 = math.tanh %11 : vector<8x32xf32>
    %c0_10 = arith.constant 0 : index
    %c0_11 = arith.constant 0 : index
    %13 = vector.load %arg6[%c0_10, %c0_11] : memref<32x16xf32, #tpu.memory_space<vmem>>, vector<32x16xf32>
    %cst_12 = arith.constant dense<0.000000e+00> : vector<8x16xf32>
    %14 = tpu.matmul %12, %13, %cst_12 {dimension_numbers = #tpu.dot_dimension_numbers<[1], [0], [0], [1], [0, 0, 1, 1], [], []>} : vector<8x32xf32>, vector<32x16xf32>, vector<8x16xf32> -> vector<8x16xf32>
    %c0_13 = arith.constant 0 : index
    %c0_14 = arith.constant 0 : index
    %15 = vector.load %arg7[%c0_13, %c0_14] : memref<1x16xf32, #tpu.memory_space<vmem>>, vector<1x16xf32>
    %16 = vector.broadcast %15 : vector<1x16xf32> to vector<8x16xf32>
    %17 = arith.addf %14, %16 : vector<8x16xf32>
    %cst_15 = arith.constant 0.000000e+00 : f32
    %18 = vector.broadcast %cst_15 : f32 to vector<8x16xf32>
    %19 = arith.maximumf %17, %18 : vector<8x16xf32>
    %20 = math.absf %17 : vector<8x16xf32>
    %cst_16 = arith.constant 0.000000e+00 : f32
    %21 = vector.broadcast %cst_16 : f32 to vector<8x16xf32>
    %22 = arith.subf %21, %20 : vector<8x16xf32>
    %23 = math.exp %22 : vector<8x16xf32>
    %24 = math.log1p %23 : vector<8x16xf32>
    %25 = arith.addf %19, %24 : vector<8x16xf32>
    %cst_17 = arith.constant 1.000000e+00 : f32
    %26 = vector.broadcast %cst_17 : f32 to vector<8x16xf32>
    %27 = arith.addf %25, %26 : vector<8x16xf32>
    %28 = vector.extract_strided_slice %27 {offsets = [0, 0], sizes = [8, 8], strides = [1, 1]} : vector<8x16xf32> to vector<8x8xf32>
    %c0_18 = arith.constant 0 : index
    %c0_19 = arith.constant 0 : index
    %29 = vector.load %arg8[%c0_18, %c0_19] : memref<8x8xf32, #tpu.memory_space<vmem>>, vector<8x8xf32>
    tpu.vector_store %arg8[%c0_18, %c0_19], %28 {strides = array<i32>} : memref<8x8xf32, #tpu.memory_space<vmem>>, vector<8x8xf32>,
    %30 = vector.extract_strided_slice %27 {offsets = [0, 8], sizes = [8, 8], strides = [1, 1]} : vector<8x16xf32> to vector<8x8xf32>
    %c0_20 = arith.constant 0 : index
    %c0_21 = arith.constant 0 : index
    %31 = vector.load %arg9[%c0_20, %c0_21] : memref<8x8xf32, #tpu.memory_space<vmem>>, vector<8x8xf32>
    tpu.vector_store %arg9[%c0_20, %c0_21], %30 {strides = array<i32>} : memref<8x8xf32, #tpu.memory_space<vmem>>, vector<8x8xf32>,
    return
  }
  func.func @transform_0(%arg0: i32) -> (i32, i32) {
    %c0_i32 = arith.constant 0 : i32
    %c0_i32_0 = arith.constant 0 : i32
    return %arg0, %c0_i32 : i32, i32
  }
  func.func @transform_1(%arg0: i32) -> (i32, i32) {
    %c0_i32 = arith.constant 0 : i32
    %c0_i32_0 = arith.constant 0 : i32
    %c0_i32_1 = arith.constant 0 : i32
    return %c0_i32, %c0_i32_0 : i32, i32
  }
  func.func @transform_2(%arg0: i32) -> (i32, i32) {
    %c0_i32 = arith.constant 0 : i32
    %c0_i32_0 = arith.constant 0 : i32
    %c0_i32_1 = arith.constant 0 : i32
    return %c0_i32, %c0_i32_0 : i32, i32
  }
  func.func @transform_3(%arg0: i32) -> (i32, i32) {
    %c0_i32 = arith.constant 0 : i32
    %c0_i32_0 = arith.constant 0 : i32
    %c0_i32_1 = arith.constant 0 : i32
    return %c0_i32, %c0_i32_0 : i32, i32
  }
  func.func @transform_4(%arg0: i32) -> (i32, i32) {
    %c0_i32 = arith.constant 0 : i32
    %c0_i32_0 = arith.constant 0 : i32
    %c0_i32_1 = arith.constant 0 : i32
    return %c0_i32, %c0_i32_0 : i32, i32
  }
  func.func @transform_5(%arg0: i32) -> (i32, i32) {
    %c0_i32 = arith.constant 0 : i32
    %c0_i32_0 = arith.constant 0 : i32
    %c0_i32_1 = arith.constant 0 : i32
    return %c0_i32, %c0_i32_0 : i32, i32
  }
  func.func @transform_6(%arg0: i32) -> (i32, i32) {
    %c0_i32 = arith.constant 0 : i32
    %c0_i32_0 = arith.constant 0 : i32
    %c0_i32_1 = arith.constant 0 : i32
    return %c0_i32, %c0_i32_0 : i32, i32
  }
  func.func @transform_7(%arg0: i32) -> (i32, i32) {
    %c0_i32 = arith.constant 0 : i32
    %c0_i32_0 = arith.constant 0 : i32
    return %arg0, %c0_i32 : i32, i32
  }
  func.func @transform_8(%arg0: i32) -> (i32, i32) {
    %c0_i32 = arith.constant 0 : i32
    %c0_i32_0 = arith.constant 0 : i32
    return %arg0, %c0_i32 : i32, i32
  }
}

</mosaic_0001>

<llo_original>
// kernel: actor_beta_forward.1
$region0: #{actor_beta_forward.1}
  #allocation0 [shape = 'u32[]', space=smem, size = 0x4, offset = 0x4, fixed_abs, tag = 'smem constant byte address 0x4 - core index']
  #allocation1 [shape = 'u32[144,128]{1,0:T(1,128)}', space=vmem, size = 0x12000, scoped, tag = 'internal scratch']
  %s0 = inlined_call_operand.hbm [shape: f32[8,16], index: 0, kind: input, shape index: {}]
  %s1 = inlined_call_operand.vmem [shape: f32[16,32], index: 1, kind: input, shape index: {}]
  %s2 = inlined_call_operand.vmem [shape: f32[1,32], index: 2, kind: input, shape index: {}]
  %s3 = inlined_call_operand.vmem [shape: f32[32,32], index: 3, kind: input, shape index: {}]
  %s4 = inlined_call_operand.vmem [shape: f32[1,32], index: 4, kind: input, shape index: {}]
  %s5 = inlined_call_operand.vmem [shape: f32[32,16], index: 5, kind: input, shape index: {}]
  %s6 = inlined_call_operand.vmem [shape: f32[1,16], index: 6, kind: input, shape index: {}]
  %s7 = inlined_call_operand.hbm [shape: f32[8,8], index: 7, kind: output, shape index: {0}]
  %s8 = inlined_call_operand.hbm [shape: f32[8,8], index: 8, kind: output, shape index: {1}]
  %9 = xla_tuple %s7, %s8
  %s10 = sld [smem:[#allocation0]]
  $region50: #{actor_beta_forward.1} parent=0
    _
  %s12 = ssub.s32 1, %s10
  %s13 = scalar_select 0, %s12, %s10
  $region1: #{actor_beta_forward.1} parent=0
    #allocation2 [shape = 'u8[4096]{0}', space=vmem, size = 0x1000, scoped, tag = 'input window, operand 0, single buffered']
    #allocation3 [shape = 's32[1]{0}', space=sflag, size = 0x4, scoped, tag = 'scoped memory for actor_beta_forward.1']
    #allocation4 [shape = 's32[1]{0}', space=sflag, size = 0x4, scoped, tag = 'scoped memory for actor_beta_forward.1']
    #allocation5 [shape = 'u8[4096]{0}', space=vmem, size = 0x1000, scoped, tag = 'output window, operand 0, single buffered']
    #allocation6 [shape = 'u8[4096]{0}', space=vmem, size = 0x1000, scoped, tag = 'output window, operand 1, single buffered']
    #allocation7 [shape = 's32[1]{0}', space=sflag, size = 0x4, scoped, tag = 'scoped memory for actor_beta_forward.1']
    %14 = vsyncpa [#allocation3], 0
    %15 = vsyncpa [#allocation4], 0
    %16 = vsyncpa [#allocation7], 0
    // Predicated region
    $region2: #{actor_beta_forward.1} parent=1 // pred_check
      _
    $region3: #{actor_beta_forward.1} parent=1 // pred_check_branch
      %18 = sbr.rel (0) target = $region5
    $region4: #{actor_beta_forward.1} parent=1 // pred_region
      %s20 = ssub.s32 128, 128
      %21 = vsyncadd [#allocation3], %s20
      %s23 = sshll.u32 [#allocation2], 4
      %s24 = int_to_ptr.vmem [resolvable:$true] %s23
      %26 = dma.hbm_to_vmem [thread:$0]  %s0, 128, %s24, [#allocation3]
    $region5: #{actor_beta_forward.1} parent=1 // pred_fallthru
      _
    // Predicated region
    $region6: #{actor_beta_forward.1} parent=1 // pred_check
      _
    $region7: #{actor_beta_forward.1} parent=1 // pred_check_branch
      %28 = sbr.rel (0) target = $region9
    $region8: #{actor_beta_forward.1} parent=1 // pred_region
      _
    $region9: #{actor_beta_forward.1} parent=1 // pred_fallthru
      _
    // Predicated region
    $region10: #{actor_beta_forward.1} parent=1 // pred_check
      _
    $region11: #{actor_beta_forward.1} parent=1 // pred_check_branch
      %30 = sbr.rel (0) target = $region13
    $region12: #{actor_beta_forward.1} parent=1 // pred_region
      _
    $region13: #{actor_beta_forward.1} parent=1 // pred_fallthru
      _
    // Predicated region
    $region14: #{actor_beta_forward.1} parent=1 // pred_check
      _
    $region15: #{actor_beta_forward.1} parent=1 // pred_check_branch
      %32 = sbr.rel (0) target = $region17
    $region16: #{actor_beta_forward.1} parent=1 // pred_region
      _
    $region17: #{actor_beta_forward.1} parent=1 // pred_fallthru
      _
    // Predicated region
    $region18: #{actor_beta_forward.1} parent=1 // pred_check
      _
    $region19: #{actor_beta_forward.1} parent=1 // pred_check_branch
      %34 = sbr.rel (0) target = $region21
    $region20: #{actor_beta_forward.1} parent=1 // pred_region
      _
    $region21: #{actor_beta_forward.1} parent=1 // pred_fallthru
      _
    // Predicated region
    $region22: #{actor_beta_forward.1} parent=1 // pred_check
      _
    $region23: #{actor_beta_forward.1} parent=1 // pred_check_branch
      %36 = sbr.rel (0) target = $region25
    $region24: #{actor_beta_forward.1} parent=1 // pred_region
      _
    $region25: #{actor_beta_forward.1} parent=1 // pred_fallthru
      _
    // Predicated region
    $region26: #{actor_beta_forward.1} parent=1 // pred_check
      _
    $region27: #{actor_beta_forward.1} parent=1 // pred_check_branch
      %38 = sbr.rel (0) target = $region29
    $region28: #{actor_beta_forward.1} parent=1 // pred_region
      _
    $region29: #{actor_beta_forward.1} parent=1 // pred_fallthru
      _
    // Predicated region
    $region30: #{actor_beta_forward.1} parent=1 // pred_check
      _
    $region31: #{actor_beta_forward.1} parent=1 // pred_check_branch
      %40 = sbr.rel (0) target = $region33
    $region32: #{actor_beta_forward.1} parent=1 // pred_region
      %41 = dma.done [#allocation3], 128
    $region33: #{actor_beta_forward.1} parent=1 // pred_fallthru
      _
    %v42 = vld [vmem:[#allocation2] sm:$0xff]
    %v43 = vld [vmem:[%s1] sm:$0xff]
    %v44 = vld [vmem:[%s1 + $0x8] sm:$0xff]
    %v45 = vld [vmem:[%s2] sm:$0x1]
    %v47 = vlaneseq
    %v48 = vshrl.u32 %v47, 7
    %v49 = vsub.s32 0, %v48
    %v50 = vrot.slane %v45, %v49
    %vm52 = vcmask 130048
    %v54 = vsel %vm52, %v42, 0
    %56 = vmatprep.subr.mxu0 0.0
    %57 = vmatpush1.msra.mxu0 %v43
    %58 = vmatprep.subr.mxu0 0.0
    %59 = vmatpush1.msra.mxu0 %v44
    %60 = vmatprep.subr.mxu0 0.0
    %61 = vmatpush1.msra.mxu0 0.0
    %62 = vmatprep.subr.mxu0 0.0
    %63 = vmatpush1.msra.mxu0 0.0
    %64 = vmatprep.subr.mxu0 0.0
    %65 = vmatpush1.msra.mxu0 0.0
    %66 = vmatprep.subr.mxu0 0.0
    %67 = vmatpush1.msra.mxu0 0.0
    %68 = vmatprep.subr.mxu0 0.0
    %69 = vmatpush1.msra.mxu0 0.0
    %70 = vmatprep.subr.mxu0 0.0
    %71 = vmatpush1.msra.mxu0 0.0
    %72 = vmatprep.subr.mxu0 0.0
    %73 = vmatpush1.msra.mxu0 0.0
    %74 = vmatprep.subr.mxu0 0.0
    %75 = vmatpush1.msra.mxu0 0.0
    %76 = vmatprep.subr.mxu0 0.0
    %77 = vmatpush1.msra.mxu0 0.0
    %78 = vmatprep.subr.mxu0 0.0
    %79 = vmatpush1.msra.mxu0 0.0
    %80 = vmatprep.subr.mxu0 0.0
    %81 = vmatpush1.msra.mxu0 0.0
    %82 = vmatprep.subr.mxu0 0.0
    %83 = vmatpush1.msra.mxu0 0.0
    %84 = vmatprep.subr.mxu0 0.0
    %85 = vmatpush1.msra.mxu0 0.0
    %86 = vmatprep.subr.mxu0 0.0
    %87 = vmatpush1.msra.mxu0 0.0
    %88 = vmatprep.subr.mxu0 0.0
    %89 = vmatpush1.msra.mxu0 0.0
    %90 = vmatprep.subr.mxu0 0.0
    %91 = vmatpush1.msra.mxu0 0.0
    %92 = vmatprep.subr.mxu0 0.0
    %93 = vmatpush1.msra.mxu0 0.0
    %94 = vmatprep.subr.mxu0 0.0
    %95 = vmatpush1.msra.mxu0 0.0
    %96 = vmatprep.subr.mxu0 0.0
    %97 = vmatpush1.msra.mxu0 0.0
    %98 = vmatprep.subr.mxu0 0.0
    %99 = vmatpush1.msra.mxu0 0.0
    %100 = vmatprep.subr.mxu0 0.0
    %101 = vmatpush1.msra.mxu0 0.0
    %102 = vmatprep.subr.mxu0 0.0
    %103 = vmatpush1.msra.mxu0 0.0
    %104 = vmatprep.subr.mxu0 0.0
    %105 = vmatpush1.msra.mxu0 0.0
    %106 = vmatprep.subr.mxu0 0.0
    %107 = vmatpush1.msra.mxu0 0.0
    %108 = vmatprep.subr.mxu0 0.0
    %109 = vmatpush1.msra.mxu0 0.0
    %110 = vmatprep.subr.mxu0 0.0
    %111 = vmatpush1.msra.mxu0 0.0
    %112 = vmatprep.subr.mxu0 0.0
    %113 = vmatpush1.msra.mxu0 0.0
    %114 = vmatprep.subr.mxu0 0.0
    %115 = vmatpush1.msra.mxu0 0.0
    %116 = vmatprep.subr.mxu0 0.0
    %117 = vmatpush1.msra.mxu0 0.0
    %118 = vmatprep.subr.mxu0 0.0
    %119 = vmatpush1.msra.mxu0 0.0
    %120 = vmatprep.mubr.f32.mxu0 0.0
    %121 = vmatmul.mubr.f32.gmra.mrb[0].mxu0 %v54
    %v122 = vpop.f32.mrb[0].mxu0
    %v123 = vadd.f32 %v50, %v122
    %v124 = vpop.f32.mrb[0].mxu0
    %125 = vdwg.mxu0
    %v126 = vtanh.pop %v123
    %v127 = vld [vmem:[%s3] sm:$0xff]
    %v128 = vld [vmem:[%s3 + $0x8] sm:$0xff]
    %v129 = vld [vmem:[%s3 + $0x10] sm:$0xff]
    %v130 = vld [vmem:[%s3 + $0x18] sm:$0xff]
    %v131 = vld [vmem:[%s4] sm:$0x1]
    %v133 = vlaneseq
    %v134 = vshrl.u32 %v133, 7
    %v135 = vsub.s32 0, %v134
    %v136 = vrot.slane %v131, %v135
    %vm138 = vcmask 261120
    %v140 = vsel %vm138, %v126, 0
    %142 = vmatprep.subr.mxu0 0.0
    %143 = vmatpush1.msra.mxu0 %v127
    %144 = vmatprep.subr.mxu0 0.0
    %145 = vmatpush1.msra.mxu0 %v128
    %146 = vmatprep.subr.mxu0 0.0
    %147 = vmatpush1.msra.mxu0 %v129
    %148 = vmatprep.subr.mxu0 0.0
    %149 = vmatpush1.msra.mxu0 %v130
    %150 = vmatprep.subr.mxu0 0.0
    %151 = vmatpush1.msra.mxu0 0.0
    %152 = vmatprep.subr.mxu0 0.0
    %153 = vmatpush1.msra.mxu0 0.0
    %154 = vmatprep.subr.mxu0 0.0
    %155 = vmatpush1.msra.mxu0 0.0
    %156 = vmatprep.subr.mxu0 0.0
    %157 = vmatpush1.msra.mxu0 0.0
    %158 = vmatprep.subr.mxu0 0.0
    %159 = vmatpush1.msra.mxu0 0.0
    %160 = vmatprep.subr.mxu0 0.0
    %161 = vmatpush1.msra.mxu0 0.0
    %162 = vmatprep.subr.mxu0 0.0
    %163 = vmatpush1.msra.mxu0 0.0
    %164 = vmatprep.subr.mxu0 0.0
    %165 = vmatpush1.msra.mxu0 0.0
    %166 = vmatprep.subr.mxu0 0.0
    %167 = vmatpush1.msra.mxu0 0.0
    %168 = vmatprep.subr.mxu0 0.0
    %169 = vmatpush1.msra.mxu0 0.0
    %170 = vmatprep.subr.mxu0 0.0
    %171 = vmatpush1.msra.mxu0 0.0
    %172 = vmatprep.subr.mxu0 0.0
    %173 = vmatpush1.msra.mxu0 0.0
    %174 = vmatprep.subr.mxu0 0.0
    %175 = vmatpush1.msra.mxu0 0.0
    %176 = vmatprep.subr.mxu0 0.0
    %177 = vmatpush1.msra.mxu0 0.0
    %178 = vmatprep.subr.mxu0 0.0
    %179 = vmatpush1.msra.mxu0 0.0
    %180 = vmatprep.subr.mxu0 0.0
    %181 = vmatpush1.msra.mxu0 0.0
    %182 = vmatprep.subr.mxu0 0.0
    %183 = vmatpush1.msra.mxu0 0.0
    %184 = vmatprep.subr.mxu0 0.0
    %185 = vmatpush1.msra.mxu0 0.0
    %186 = vmatprep.subr.mxu0 0.0
    %187 = vmatpush1.msra.mxu0 0.0
    %188 = vmatprep.subr.mxu0 0.0
    %189 = vmatpush1.msra.mxu0 0.0
    %190 = vmatprep.subr.mxu0 0.0
    %191 = vmatpush1.msra.mxu0 0.0
    %192 = vmatprep.subr.mxu0 0.0
    %193 = vmatpush1.msra.mxu0 0.0
    %194 = vmatprep.subr.mxu0 0.0
    %195 = vmatpush1.msra.mxu0 0.0
    %196 = vmatprep.subr.mxu0 0.0
    %197 = vmatpush1.msra.mxu0 0.0
    %198 = vmatprep.subr.mxu0 0.0
    %199 = vmatpush1.msra.mxu0 0.0
    %200 = vmatprep.subr.mxu0 0.0
    %201 = vmatpush1.msra.mxu0 0.0
    %202 = vmatprep.subr.mxu0 0.0
    %203 = vmatpush1.msra.mxu0 0.0
    %204 = vmatprep.subr.mxu0 0.0
    %205 = vmatpush1.msra.mxu0 0.0
    %206 = vmatprep.mubr.f32.mxu0 0.0
    %207 = vmatmul.mubr.f32.gmra.mrb[0].mxu0 %v140
    %v208 = vpop.f32.mrb[0].mxu0
    %v209 = vadd.f32 %v136, %v208
    %v210 = vpop.f32.mrb[0].mxu0
    %211 = vdwg.mxu0
    %v212 = vtanh.pop %v209
    %v213 = vld [vmem:[%s5] sm:$0xff]
    %v214 = vld [vmem:[%s5 + $0x8] sm:$0xff]
    %v215 = vld [vmem:[%s5 + $0x10] sm:$0xff]
    %v216 = vld [vmem:[%s5 + $0x18] sm:$0xff]
    %v217 = vld [vmem:[%s6] sm:$0x1]
    %v219 = vlaneseq
    %v220 = vshrl.u32 %v219, 7
    %v221 = vsub.s32 0, %v220
    %v222 = vrot.slane %v217, %v221
    %v225 = vsel %vm138, %v212, 0
    %227 = vmatprep.subr.mxu0 0.0
    %228 = vmatpush1.msra.mxu0 %v213
    %229 = vmatprep.subr.mxu0 0.0
    %230 = vmatpush1.msra.mxu0 %v214
    %231 = vmatprep.subr.mxu0 0.0
    %232 = vmatpush1.msra.mxu0 %v215
    %233 = vmatprep.subr.mxu0 0.0
    %234 = vmatpush1.msra.mxu0 %v216
    %235 = vmatprep.subr.mxu0 0.0
    %236 = vmatpush1.msra.mxu0 0.0
    %237 = vmatprep.subr.mxu0 0.0
    %238 = vmatpush1.msra.mxu0 0.0
    %239 = vmatprep.subr.mxu0 0.0
    %240 = vmatpush1.msra.mxu0 0.0
    %241 = vmatprep.subr.mxu0 0.0
    %242 = vmatpush1.msra.mxu0 0.0
    %243 = vmatprep.subr.mxu0 0.0
    %244 = vmatpush1.msra.mxu0 0.0
    %245 = vmatprep.subr.mxu0 0.0
    %246 = vmatpush1.msra.mxu0 0.0
    %247 = vmatprep.subr.mxu0 0.0
    %248 = vmatpush1.msra.mxu0 0.0
    %249 = vmatprep.subr.mxu0 0.0
    %250 = vmatpush1.msra.mxu0 0.0
    %251 = vmatprep.subr.mxu0 0.0
    %252 = vmatpush1.msra.mxu0 0.0
    %253 = vmatprep.subr.mxu0 0.0
    %254 = vmatpush1.msra.mxu0 0.0
    %255 = vmatprep.subr.mxu0 0.0
    %256 = vmatpush1.msra.mxu0 0.0
    %257 = vmatprep.subr.mxu0 0.0
    %258 = vmatpush1.msra.mxu0 0.0
    %259 = vmatprep.subr.mxu0 0.0
    %260 = vmatpush1.msra.mxu0 0.0
    %261 = vmatprep.subr.mxu0 0.0
    %262 = vmatpush1.msra.mxu0 0.0
    %263 = vmatprep.subr.mxu0 0.0
    %264 = vmatpush1.msra.mxu0 0.0
    %265 = vmatprep.subr.mxu0 0.0
    %266 = vmatpush1.msra.mxu0 0.0
    %267 = vmatprep.subr.mxu0 0.0
    %268 = vmatpush1.msra.mxu0 0.0
    %269 = vmatprep.subr.mxu0 0.0
    %270 = vmatpush1.msra.mxu0 0.0
    %271 = vmatprep.subr.mxu0 0.0
    %272 = vmatpush1.msra.mxu0 0.0
    %273 = vmatprep.subr.mxu0 0.0
    %274 = vmatpush1.msra.mxu0 0.0
    %275 = vmatprep.subr.mxu0 0.0
    %276 = vmatpush1.msra.mxu0 0.0
    %277 = vmatprep.subr.mxu0 0.0
    %278 = vmatpush1.msra.mxu0 0.0
    %279 = vmatprep.subr.mxu0 0.0
    %280 = vmatpush1.msra.mxu0 0.0
    %281 = vmatprep.subr.mxu0 0.0
    %282 = vmatpush1.msra.mxu0 0.0
    %283 = vmatprep.subr.mxu0 0.0
    %284 = vmatpush1.msra.mxu0 0.0
    %285 = vmatprep.subr.mxu0 0.0
    %286 = vmatpush1.msra.mxu0 0.0
    %287 = vmatprep.subr.mxu0 0.0
    %288 = vmatpush1.msra.mxu0 0.0
    %289 = vmatprep.subr.mxu0 0.0
    %290 = vmatpush1.msra.mxu0 0.0
    %291 = vmatprep.mubr.f32.mxu0 0.0
    %292 = vmatmul.mubr.f32.gmra.mrb[0].mxu0 %v225
    %v293 = vpop.f32.mrb[0].mxu0
    %v294 = vadd.f32 %v222, %v293
    %v295 = vpop.f32.mrb[0].mxu0
    %296 = vdwg.mxu0
    %v297 = vmax.f32 %v294, 0.0
    %v298 = vand.u32 2147483647, %v294
    %v299 = vsub.f32 0.0, %v298
    %v300 = vmul.f32 %v299, 1.442695
    %v301 = vpow.pop %v300
    %v302 = vadd.f32 %v301, 1.0
    %v303 = vlog2.pop %v302
    %v304 = vmul.f32 %v303, 0.6931472
    %v305 = vmul.f32 -0.5, %v301
    %v306 = vadd.f32 %v305, 1.0
    %v307 = vmul.f32 %v306, %v301
    %v308 = vand.u32 2147483647, %v301
    %vm309 = vcmp.lt.f32.partialorder %v308, 0.0004427343
    %v310 = vsel %vm309, %v307, %v304
    %v311 = vadd.f32 %v297, %v310
    %v312 = vadd.f32 %v311, 1.0
    %vm313 = vcmask 64512
    %314 = vst.msk [vmem:[#allocation5] sm:$0xff] %vm313, %v312
    %316 = vrot.lane.b32.xlu0 %v312, 120
    %v317 = vpop.permute.xlu0 %316
    %319 = vst.msk [vmem:[#allocation6] sm:$0xff] %vm313, %v317
    // Predicated region
    $region34: #{actor_beta_forward.1} parent=1 // pred_check
      _
    $region35: #{actor_beta_forward.1} parent=1 // pred_check_branch
      %321 = sbr.rel (0) target = $region37
    $region36: #{actor_beta_forward.1} parent=1 // pred_region
      %s323 = ssub.s32 128, 128
      %324 = vsyncadd [#allocation4], %s323
      %s326 = sshll.u32 [#allocation5], 4
      %s327 = int_to_ptr.vmem [resolvable:$true] %s326
      %329 = dma.vmem_to_hbm [thread:$0]  %s327, 128, %s7, [#allocation4]
    $region37: #{actor_beta_forward.1} parent=1 // pred_fallthru
      _
    // Predicated region
    $region38: #{actor_beta_forward.1} parent=1 // pred_check
      _
    $region39: #{actor_beta_forward.1} parent=1 // pred_check_branch
      %331 = sbr.rel (0) target = $region41
    $region40: #{actor_beta_forward.1} parent=1 // pred_region
      %s333 = ssub.s32 128, 128
      %334 = vsyncadd [#allocation7], %s333
      %s336 = sshll.u32 [#allocation6], 4
      %s337 = int_to_ptr.vmem [resolvable:$true] %s336
      %339 = dma.vmem_to_hbm [thread:$0]  %s337, 128, %s8, [#allocation7]
    $region41: #{actor_beta_forward.1} parent=1 // pred_fallthru
      _
    // Predicated region
    $region42: #{actor_beta_forward.1} parent=1 // pred_check
      _
    $region43: #{actor_beta_forward.1} parent=1 // pred_check_branch
      %341 = sbr.rel (0) target = $region45
    $region44: #{actor_beta_forward.1} parent=1 // pred_region
      %342 = dma.done [#allocation4], 128
    $region45: #{actor_beta_forward.1} parent=1 // pred_fallthru
      _
    // Predicated region
    $region46: #{actor_beta_forward.1} parent=1 // pred_check
      _
    $region47: #{actor_beta_forward.1} parent=1 // pred_check_branch
      %344 = sbr.rel (0) target = $region49
    $region48: #{actor_beta_forward.1} parent=1 // pred_region
      %345 = dma.done [#allocation7], 128
    $region49: #{actor_beta_forward.1} parent=1 // pred_fallthru
      _
    %346 = vsyncpa [#allocation3], 1
    %347 = vsyncpa [#allocation4], 1
    %348 = vsyncpa [#allocation7], 1

</llo_original>
